<compile_context>
chip_gen: v6e
topology: v6e:2x2x1
jax: 0.10.0
libtpu: 0.0.40
codegen_flags: <defaults>
</compile_context>

<pallas_src>
import functools

import jax
import jax.numpy as jnp
from jax.experimental import pallas as pl
from jax.experimental.pallas import tpu as pltpu


def _round_up(n, m):
    return ((n + m - 1) // m) * m


def _mse_kernel(s_ref, t_ref, out_ref, acc_ref, *, n_rows, n_cols, tm, tn,
                row_tiles_per_split, mask_rows, mask_cols):
    c = pl.program_id(0)   # TensorCore split axis ("parallel")
    i = pl.program_id(1)   # row-tile axis ("arbitrary", reduction)
    j = pl.program_id(2)   # col-tile axis ("arbitrary", reduction)

    @pl.when((i == 0) & (j == 0))
    def _init():
        acc_ref[...] = jnp.zeros_like(acc_ref)

    d = s_ref[...].astype(jnp.float32) - t_ref[...].astype(jnp.float32)
    sq = d * d

    if mask_rows or mask_cols:
        ok = None
        if mask_rows:
            # Global (unclamped) row tile index; fully masks the duplicated
            # tail tile of an uneven per-core split and the ragged row tail.
            rows_valid = n_rows - (c * row_tiles_per_split + i) * tm
            row_ids = jax.lax.broadcasted_iota(jnp.int32, sq.shape, 0)
            ok = row_ids < rows_valid
        if mask_cols:
            cols_valid = n_cols - j * tn
            col_ids = jax.lax.broadcasted_iota(jnp.int32, sq.shape, 1)
            cmask = col_ids < cols_valid
            ok = cmask if ok is None else (ok & cmask)
        sq = jnp.where(ok, sq, jnp.float32(0.0))

    # Fold (tm, width) -> (8, width) with pure VPU adds across sublane groups;
    # the expensive cross-lane reduce happens exactly once, in the epilogue.
    acc_ref[...] += jnp.sum(sq.reshape(tm // 8, 8, sq.shape[-1]), axis=0)

    @pl.when((i == pl.num_programs(1) - 1) & (j == pl.num_programs(2) - 1))
    def _finalize():
        out_ref[0, 0] = jnp.sum(acc_ref[...])


_MIN_TILE_BYTES = 2 * 1024 * 1024
_MAX_TILE_BYTES = 6 * 1024 * 1024


def _vmem_capacity_bytes():
    try:
        return int(pltpu.get_tpu_info().vmem_capacity_bytes)
    except Exception:
        # Conservative default: v7x has 64 MiB of VMEM per TensorCore.
        return 64 * 1024 * 1024


def _widen_factor(n_rows, n_cols, max_cols=2048):
    """Largest divisor k of n_rows maximizing lane utilization of n_cols*k."""
    if n_rows <= 1 or n_cols % 128 == 0:
        return 1
    best_k = 1
    best_util = n_cols / _round_up(n_cols, 128)
    k_max = min(n_rows, max(1, max_cols // n_cols))
    for k in range(2, k_max + 1):
        if n_rows % k:
            continue
        w = n_cols * k
        util = w / _round_up(w, 128)
        if util >= best_util:   # ties -> larger k (fewer, wider rows)
            best_k, best_util = k, util
    return best_k


def mse_loss_pallas(out_s, out_t, *, target_tile_bytes=None, min_split_tiles=8):
    """Pallas equivalent of F.mse_loss(out_s, out_t) (elementwise mean)."""
    assert out_s.shape == out_t.shape, (out_s.shape, out_t.shape)

    # MSE is an elementwise mean over any shape; view as 2-D (rows, cols).
    if out_s.ndim == 0:
        out_s, out_t = out_s.reshape(1, 1), out_t.reshape(1, 1)
    elif out_s.ndim == 1:
        out_s, out_t = out_s[None, :], out_t[None, :]
    elif out_s.ndim > 2:
        out_s = out_s.reshape(-1, out_s.shape[-1])
        out_t = out_t.reshape(-1, out_t.shape[-1])

    n_rows, n_cols = out_s.shape
    total = n_rows * n_cols

    # Narrow / non-128-multiple class counts waste VMEM lanes; fold row factors
    # into the column axis (free, contiguity-preserving reshape).
    k = _widen_factor(n_rows, n_cols)
    if k > 1:
        n_rows, n_cols = n_rows // k, n_cols * k
        out_s = out_s.reshape(n_rows, n_cols)
        out_t = out_t.reshape(n_rows, n_cols)

    s_item = jnp.dtype(out_s.dtype).itemsize
    t_item = jnp.dtype(out_t.dtype).itemsize
    itemsize = max(s_item, t_item)
    # Sublane packing: 8 rows for 4-byte, 16 for 2-byte, 32 for 1-byte dtypes.
    row_align = 8 * max(1, 4 // min(s_item, t_item))

    vmem_cap = _vmem_capacity_bytes()
    vmem_limit = min(vmem_cap * 3 // 4, 96 * 1024 * 1024)   # 48 MiB on v7x, 96 on v5e/v6e
    if target_tile_bytes is None:
        target_tile_bytes = min(_MAX_TILE_BYTES,
                                max(_MIN_TILE_BYTES, vmem_limit // 12))

    # ---- tile selection (sized against the lane-padded VMEM footprint) ----
    padded_cols = _round_up(n_cols, 128)
    bytes_per_row = padded_cols * itemsize
    if row_align * bytes_per_row <= target_tile_bytes:
        # Full-width blocks; tile the row axis only.
        tn = n_cols
        tm = (target_tile_bytes // bytes_per_row) // row_align * row_align
        tm = max(row_align, min(tm, _round_up(n_rows, row_align)))
        col_tiles = 1
        mask_cols = False
    else:
        # Very wide rows (huge-vocab logits): block the column axis as well.
        tn = (target_tile_bytes // (row_align * itemsize)) // 128 * 128
        tn = max(128, min(tn, padded_cols))
        tm = row_align
        col_tiles = pl.cdiv(n_cols, tn)
        mask_cols = (n_cols % tn) != 0

    total_row_tiles = pl.cdiv(n_rows, tm)
    # Shard row tiles across the two TensorCores of a v7x chip. On 1-TC chips
    # the extra leading axis is a harmless serial loop; only enable it when
    # there are enough tiles that a possible duplicated (masked) tail tile on
    # an uneven split is negligible.
    num_splits = 2 if total_row_tiles >= min_split_tiles else 1
    row_tiles_per_split = pl.cdiv(total_row_tiles, num_splits)
    mask_rows = ((n_rows % tm) != 0) or \
                (num_splits * row_tiles_per_split != total_row_tiles)

    def in_index_map(c, i, j):
        # Clamp so the (masked) duplicate tail tile of an uneven core split
        # never maps a block past the end of the array.
        row_block = jnp.minimum(c * row_tiles_per_split + i, total_row_tiles - 1)
        return (row_block, j)

    kernel = functools.partial(
        _mse_kernel, n_rows=n_rows, n_cols=n_cols, tm=tm, tn=tn,
        row_tiles_per_split=row_tiles_per_split,
        mask_rows=mask_rows, mask_cols=mask_cols)

    cost = pl.CostEstimate(
        flops=3 * total, transcendentals=0,
        bytes_accessed=int(out_s.size * s_item + out_t.size * t_item
                           + 4 * num_splits))

    partials = pl.pallas_call(
        kernel,
        out_shape=jax.ShapeDtypeStruct((num_splits, 1), jnp.float32),
        grid_spec=pltpu.PrefetchScalarGridSpec(
            num_scalar_prefetch=0,
            grid=(num_splits, row_tiles_per_split, col_tiles),
            in_specs=[
                pl.BlockSpec((tm, tn), in_index_map),
                pl.BlockSpec((tm, tn), in_index_map),
            ],
            out_specs=pl.BlockSpec((1, 1), lambda c, i, j: (c, 0),
                                   memory_space=pltpu.SMEM),
            scratch_shapes=[pltpu.VMEM((8, tn), jnp.float32)],
        ),
        compiler_params=pltpu.CompilerParams(
            # Axis 0: per-TensorCore shard (v7x megacore). Axes 1/2 accumulate
            # into scratch / the resident output block -> must stay "arbitrary".
            dimension_semantics=("parallel", "arbitrary", "arbitrary"),
            vmem_limit_bytes=int(vmem_limit),
        ),
        cost_estimate=cost,
    )(out_s, out_t)

    return jnp.sum(partials) * (1.0 / total)


def logits_loss(out_s, out_t):
    """Forward of the PyTorch `Logits` module."""
    # For genuinely tiny inputs the fixed pallas_call overhead exceeds the data
    # movement; a fused XLA reduction is the right tool there.
    if out_s.size * jnp.dtype(out_s.dtype).itemsize < 256 * 1024:
        return jnp.mean((out_s.astype(jnp.float32) - out_t.astype(jnp.float32)) ** 2)
    return mse_loss_pallas(out_s, out_t)


if __name__ == "__main__":
    key = jax.random.PRNGKey(0)
    ks = jax.random.split(key, 10)

    def ref_mse(a, b):
        return jnp.mean((a.astype(jnp.float32) - b.astype(jnp.float32)) ** 2)

    # 1) Small student/teacher logits: (batch=16, num_classes=128), f32.
    s = jax.random.normal(ks[0], (16, 128), dtype=jnp.float32)
    t = jax.random.normal(ks[1], (16, 128), dtype=jnp.float32)
    out = jax.block_until_ready(mse_loss_pallas(s, t))
    assert jnp.allclose(out, ref_mse(s, t), rtol=1e-5, atol=1e-6), (out, ref_mse(s, t))

    # 2) Ragged batch + non-128-multiple class count (lane widening + row mask).
    s = jax.random.normal(ks[2], (50, 200), dtype=jnp.float32)
    t = jax.random.normal(ks[3], (50, 200), dtype=jnp.float32)
    out = jax.block_until_ready(mse_loss_pallas(s, t))
    assert jnp.allclose(out, ref_mse(s, t), rtol=1e-5, atol=1e-6), (out, ref_mse(s, t))

    # 3) bf16 logits (upcast to f32 inside the kernel; halves HBM traffic).
    s = jax.random.normal(ks[4], (64, 256), dtype=jnp.float32).astype(jnp.bfloat16)
    t = jax.random.normal(ks[5], (64, 256), dtype=jnp.float32).astype(jnp.bfloat16)
    out = jax.block_until_ready(mse_loss_pallas(s, t))
    assert jnp.allclose(out, ref_mse(s, t), rtol=1e-5, atol=1e-6), (out, ref_mse(s, t))

    # 4) Force tiny row tiles -> exercises the 2-way TensorCore split with an
    #    uneven (clamped + fully masked) tail tile on the second split.
    s = jax.random.normal(ks[6], (100, 128), dtype=jnp.float32)
    t = jax.random.normal(ks[7], (100, 128), dtype=jnp.float32)
    out = jax.block_until_ready(
        mse_loss_pallas(s, t, target_tile_bytes=4096, min_split_tiles=2))
    assert jnp.allclose(out, ref_mse(s, t), rtol=1e-5, atol=1e-6), (out, ref_mse(s, t))

    # 5) Force column blocking (wide-vocab path) + column tail mask.
    s = jax.random.normal(ks[8], (64, 300), dtype=jnp.float32)
    t = jax.random.normal(ks[9], (64, 300), dtype=jnp.float32)
    out = jax.block_until_ready(mse_loss_pallas(s, t, target_tile_bytes=4096))
    assert jnp.allclose(out, ref_mse(s, t), rtol=1e-5, atol=1e-6), (out, ref_mse(s, t))

    # 6) Module-level entry point (tiny input takes the fused-XLA fallback).
    loss = jax.block_until_ready(logits_loss(s, t))
    assert jnp.allclose(loss, ref_mse(s, t), rtol=1e-5, atol=1e-6), (loss, ref_mse(s, t))

    print("KERNEL_OK")
</pallas_src>

<mosaic_0001>
module attributes {stable_mosaic.version = 11 : i64} {
  func.func @_mse_kernel(%arg0: i32, %arg1: i32, %arg2: i32, %arg3: memref<16x128xf32, #tpu.memory_space<vmem>>, %arg4: memref<16x128xf32, #tpu.memory_space<vmem>>, %arg5: memref<1x1xf32, #tpu.memory_space<smem>>, %arg6: memref<8x128xf32, #tpu.memory_space<vmem>>) attributes {dimension_semantics = [#tpu.dimension_semantics<parallel>, #tpu.dimension_semantics<arbitrary>, #tpu.dimension_semantics<arbitrary>], iteration_bounds = array<i64: 1, 1, 1>, scalar_prefetch = 0 : i64, scratch_operands = 1 : i64, tpu.core_type = #tpu.core_type<tc>, window_params = [{transform_indices = @transform_0, window_bounds = array<i64: 16, 128>}, {transform_indices = @transform_1, window_bounds = array<i64: 16, 128>}, {transform_indices = @transform_2, window_bounds = array<i64: 1, 1>}]} {
    %c0_i32 = arith.constant 0 : i32
    %0 = arith.cmpi eq, %arg1, %c0_i32 : i32
    %c0_i32_0 = arith.constant 0 : i32
    %1 = arith.cmpi eq, %arg2, %c0_i32_0 : i32
    %2 = arith.andi %0, %1 : i1
    %3 = arith.extui %2 : i1 to i32
    %c0_i32_1 = arith.constant 0 : i32
    %4 = arith.cmpi ne, %3, %c0_i32_1 : i32
    scf.if %4 {
      %cst_12 = arith.constant 0.000000e+00 : f32
      %19 = vector.broadcast %cst_12 : f32 to vector<8x128xf32>
      %c0_13 = arith.constant 0 : index
      %c0_14 = arith.constant 0 : index
      %20 = vector.load %arg6[%c0_13, %c0_14] : memref<8x128xf32, #tpu.memory_space<vmem>>, vector<8x128xf32>
      tpu.vector_store %arg6[%c0_13, %c0_14], %19 {strides = array<i32>} : memref<8x128xf32, #tpu.memory_space<vmem>>, vector<8x128xf32>,
    } else {
    }
    %c0 = arith.constant 0 : index
    %c0_2 = arith.constant 0 : index
    %5 = vector.load %arg3[%c0, %c0_2] : memref<16x128xf32, #tpu.memory_space<vmem>>, vector<16x128xf32>
    %c0_3 = arith.constant 0 : index
    %c0_4 = arith.constant 0 : index
    %6 = vector.load %arg4[%c0_3, %c0_4] : memref<16x128xf32, #tpu.memory_space<vmem>>, vector<16x128xf32>
    %7 = arith.subf %5, %6 : vector<16x128xf32>
    %8 = arith.mulf %7, %7 : vector<16x128xf32>
    %c0_5 = arith.constant 0 : index
    %c0_6 = arith.constant 0 : index
    %9 = vector.load %arg6[%c0_5, %c0_6] : memref<8x128xf32, #tpu.memory_space<vmem>>, vector<8x128xf32>
    %10 = vector.shape_cast %8 : vector<16x128xf32> to vector<2x8x128xf32>
    %cst = arith.constant dense<0.000000e+00> : vector<8x128xf32>
    %11 = vector.multi_reduction <add>, %10, %cst [0] : vector<2x8x128xf32> to vector<8x128xf32>
    %12 = arith.addf %9, %11 : vector<8x128xf32>
    %c0_7 = arith.constant 0 : index
    %c0_8 = arith.constant 0 : index
    %13 = vector.load %arg6[%c0_7, %c0_8] : memref<8x128xf32, #tpu.memory_space<vmem>>, vector<8x128xf32>
    tpu.vector_store %arg6[%c0_7, %c0_8], %12 {strides = array<i32>} : memref<8x128xf32, #tpu.memory_space<vmem>>, vector<8x128xf32>,
    %c0_i32_9 = arith.constant 0 : i32
    %14 = arith.cmpi eq, %arg1, %c0_i32_9 : i32
    %c0_i32_10 = arith.constant 0 : i32
    %15 = arith.cmpi eq, %arg2, %c0_i32_10 : i32
    %16 = arith.andi %14, %15 : i1
    %17 = arith.extui %16 : i1 to i32
    %c0_i32_11 = arith.constant 0 : i32
    %18 = arith.cmpi ne, %17, %c0_i32_11 : i32
    scf.if %18 {
      %c0_12 = arith.constant 0 : index
      %c0_13 = arith.constant 0 : index
      %19 = vector.load %arg6[%c0_12, %c0_13] : memref<8x128xf32, #tpu.memory_space<vmem>>, vector<8x128xf32>
      %20 = vector.shape_cast %19 : vector<8x128xf32> to vector<1x8x128xf32>
      %cst_14 = arith.constant dense<0.000000e+00> : vector<1xf32>
      %21 = vector.multi_reduction <add>, %20, %cst_14 [1, 2] : vector<1x8x128xf32> to vector<1xf32>
      %22 = vector.shape_cast %21 : vector<1xf32> to vector<1x1x1xf32>
      %23 = vector.extract %22[0, 0, 0] : f32 from vector<1x1x1xf32>
      %c0_15 = arith.constant 0 : index
      %c0_16 = arith.constant 0 : index
      %24 = memref.load %arg5[%c0_15, %c0_16] : memref<1x1xf32, #tpu.memory_space<smem>>
      memref.store %23, %arg5[%c0_15, %c0_16] : memref<1x1xf32, #tpu.memory_space<smem>>
    } else {
    }
    return
  }
  func.func @transform_0(%arg0: i32, %arg1: i32, %arg2: i32) -> (i32, i32) {
    %c1_i32 = arith.constant 1 : i32
    %0 = arith.muli %arg0, %c1_i32 : i32
    %1 = arith.addi %0, %arg1 : i32
    %c0_i32 = arith.constant 0 : i32
    %2 = arith.minsi %1, %c0_i32 : i32
    %c0_i32_0 = arith.constant 0 : i32
    return %2, %arg2 : i32, i32
  }
  func.func @transform_1(%arg0: i32, %arg1: i32, %arg2: i32) -> (i32, i32) {
    %c1_i32 = arith.constant 1 : i32
    %0 = arith.muli %arg0, %c1_i32 : i32
    %1 = arith.addi %0, %arg1 : i32
    %c0_i32 = arith.constant 0 : i32
    %2 = arith.minsi %1, %c0_i32 : i32
    %c0_i32_0 = arith.constant 0 : i32
    return %2, %arg2 : i32, i32
  }
  func.func @transform_2(%arg0: i32, %arg1: i32, %arg2: i32) -> (i32, i32) {
    %c0_i32 = arith.constant 0 : i32
    %c0_i32_0 = arith.constant 0 : i32
    return %arg0, %c0_i32 : i32, i32
  }
}

</mosaic_0001>

<llo_original>
// kernel: tpu_custom_call.1
$region0: #{tpu_custom_call.1}
  #allocation0 [shape = 'u32[]', space=smem, size = 0x4, offset = 0x4, fixed_abs, tag = 'smem constant byte address 0x4 - core index']
  #allocation1 [shape = 'u32[144,128]{1,0:T(1,128)}', space=vmem, size = 0x12000, scoped, tag = 'internal scratch']
  #allocation2 [shape = 'f32[8,128]{1,0:T(8,128)}', space=vmem, size = 0x1000, scoped, tag = 'scratch operand']
  %s0 = inlined_call_operand.hbm [shape: f32[16,128], index: 0, kind: input, shape index: {}]
  %s1 = inlined_call_operand.hbm [shape: f32[16,128], index: 1, kind: input, shape index: {}]
  %s2 = inlined_call_operand.hbm [shape: f32[1,1], index: 2, kind: output, shape index: {}]
  %s3 = sld [smem:[#allocation0]]
  $region34: #{tpu_custom_call.1} parent=0
    _
  %s5 = ssub.s32 1, %s3
  %s6 = scalar_select 0, %s5, %s3
  $region1: #{tpu_custom_call.1} parent=0
    #allocation3 [shape = 'u8[8192]{0}', space=vmem, size = 0x2000, scoped, tag = 'input window, operand 0, single buffered']
    #allocation4 [shape = 's32[1]{0}', space=sflag, size = 0x4, scoped, tag = 'scoped memory for tpu_custom_call.1']
    #allocation5 [shape = 's32[1]{0}', space=sflag, size = 0x4, scoped, tag = 'scoped memory for tpu_custom_call.1']
    #allocation6 [shape = 'u8[8192]{0}', space=vmem, size = 0x2000, scoped, tag = 'input window, operand 1, single buffered']
    #allocation7 [shape = 's32[1]{0}', space=sflag, size = 0x4, scoped, tag = 'scoped memory for tpu_custom_call.1']
    #allocation8 [shape = 'u8[512]{0}', space=smem, size = 0x200, scoped, tag = 'output window, operand 0, single buffered']
    %7 = vsyncpa [#allocation4], 0
    %8 = vsyncpa [#allocation7], 0
    %9 = vsyncpa [#allocation5], 0
    // Predicated region
    $region2: #{tpu_custom_call.1} parent=1 // pred_check
      _
    $region3: #{tpu_custom_call.1} parent=1 // pred_check_branch
      %11 = sbr.rel (0) target = $region5
    $region4: #{tpu_custom_call.1} parent=1 // pred_region
      %s12 = sadd.s32 0, 0
      %p13 = scmp.lt.s32.totalorder %s12, 0
      %s14 = scalar_select %p13, %s12, 0
      %s15 = smul.u32 2, %s14
      %s17 = ssub.s32 256, 256
      %18 = vsyncadd [#allocation4], %s17
      %s19 = smul.addr %s15, 128
      %s20 = scalar_lea.hbm %s0, %s19
      %s21 = sshll.u32 [#allocation3], 4
      %s22 = int_to_ptr.vmem [resolvable:$true] %s21
      %27 = dma.hbm_to_vmem [thread:$0]  %s20, 256, %s22, [#allocation4], 128, 128, 8
    $region5: #{tpu_custom_call.1} parent=1 // pred_fallthru
      _
    // Predicated region
    $region6: #{tpu_custom_call.1} parent=1 // pred_check
      _
    $region7: #{tpu_custom_call.1} parent=1 // pred_check_branch
      %29 = sbr.rel (0) target = $region9
    $region8: #{tpu_custom_call.1} parent=1 // pred_region
      %s30 = sadd.s32 0, 0
      %p31 = scmp.lt.s32.totalorder %s30, 0
      %s32 = scalar_select %p31, %s30, 0
      %s33 = smul.u32 2, %s32
      %s35 = ssub.s32 256, 256
      %36 = vsyncadd [#allocation7], %s35
      %s37 = smul.addr %s33, 128
      %s38 = scalar_lea.hbm %s1, %s37
      %s39 = sshll.u32 [#allocation6], 4
      %s40 = int_to_ptr.vmem [resolvable:$true] %s39
      %45 = dma.hbm_to_vmem [thread:$0]  %s38, 256, %s40, [#allocation7], 128, 128, 8
    $region9: #{tpu_custom_call.1} parent=1 // pred_fallthru
      _
    // Predicated region
    $region10: #{tpu_custom_call.1} parent=1 // pred_check
      _
    $region11: #{tpu_custom_call.1} parent=1 // pred_check_branch
      %47 = sbr.rel (0) target = $region13
    $region12: #{tpu_custom_call.1} parent=1 // pred_region
      %48 = dma.done [#allocation4], 256
    $region13: #{tpu_custom_call.1} parent=1 // pred_fallthru
      _
    // Predicated region
    $region14: #{tpu_custom_call.1} parent=1 // pred_check
      _
    $region15: #{tpu_custom_call.1} parent=1 // pred_check_branch
      %50 = sbr.rel (0) target = $region17
    $region16: #{tpu_custom_call.1} parent=1 // pred_region
      %51 = dma.done [#allocation7], 256
    $region17: #{tpu_custom_call.1} parent=1 // pred_fallthru
      _
    %s52 = sadd.s32 0, 0
    %p53 = scmp.lt.s32.totalorder %s52, 0
    %s54 = scalar_select %p53, %s52, 0
    %s55 = smul.u32 2, %s54
    %s56 = sadd.s32 0, 0
    %p57 = scmp.lt.s32.totalorder %s56, 0
    %s58 = scalar_select %p57, %s56, 0
    %s59 = smul.u32 2, %s58
    %p60 = scmp.eq.s32.totalorder 0, 0
    %p61 = scmp.eq.s32.totalorder 0, 0
    %p62 = pnand %p60, %p61
    %p63 = pneg %p62
    // Predicated region
    $region18: #{tpu_custom_call.1} parent=1 // pred_check
      _
    $region19: #{tpu_custom_call.1} parent=1 // pred_check_branch
      %65 = sbr.rel (%p62) target = $region21
    $region20: #{tpu_custom_call.1} parent=1 // pred_region
      %66 = vst [vmem:[#allocation2] sm:$0xff] 0.0
    $region21: #{tpu_custom_call.1} parent=1 // pred_fallthru
      _
    %v67 = vld [vmem:[#allocation3] sm:$0xff]
    %v68 = vld [vmem:[#allocation3 + $0x8] sm:$0xff]
    %v69 = vld [vmem:[#allocation6] sm:$0xff]
    %v70 = vld [vmem:[#allocation6 + $0x8] sm:$0xff]
    %v71 = vsub.f32 %v67, %v69
    %v72 = vsub.f32 %v68, %v70
    %v73 = vmul.f32 %v71, %v71
    %v74 = vmul.f32 %v72, %v72
    %v75 = vld [vmem:[#allocation2] sm:$0xff]
    %v76 = vadd.f32 %v73, %v74
    %v77 = vadd.f32 %v75, %v76
    %78 = vst [vmem:[#allocation2] sm:$0xff] %v77
    // Predicated region
    $region22: #{tpu_custom_call.1} parent=1 // pred_check
      _
    $region23: #{tpu_custom_call.1} parent=1 // pred_check_branch
      %80 = sbr.rel (%p62) target = $region25
    $region24: #{tpu_custom_call.1} parent=1 // pred_region
      %v81 = vld [vmem:[#allocation2] sm:$0xff]
      %82 = vadd.xlane.f32.xlu0 %v81
      %v83 = vpop.xlane.xlu0 %82
      %v84 = vrot.slane %v83, 4
      %v85 = vadd.f32 %v83, %v84
      %v86 = vrot.slane %v85, 2
      %v87 = vadd.f32 %v85, %v86
      %v88 = vrot.slane %v87, 1
      %v89 = vadd.f32 %v87, %v88
      %s90 = vtos %v89
      %s91 = scalar_lea.smem [#allocation8], 0
      %92 = sst [smem:[%s91]] %s90
    $region25: #{tpu_custom_call.1} parent=1 // pred_fallthru
      _
    // Predicated region
    $region26: #{tpu_custom_call.1} parent=1 // pred_check
      _
    $region27: #{tpu_custom_call.1} parent=1 // pred_check_branch
      %94 = sbr.rel (0) target = $region29
    $region28: #{tpu_custom_call.1} parent=1 // pred_region
      %s96 = ssub.s32 16, 16
      %97 = vsyncadd [#allocation5], %s96
      %100 = dma.smem_to_hbm [#allocation8], 16, %s2, [#allocation5]
    $region29: #{tpu_custom_call.1} parent=1 // pred_fallthru
      _
    // Predicated region
    $region30: #{tpu_custom_call.1} parent=1 // pred_check
      _
    $region31: #{tpu_custom_call.1} parent=1 // pred_check_branch
      %102 = sbr.rel (0) target = $region33
    $region32: #{tpu_custom_call.1} parent=1 // pred_region
      %103 = dma.done [#allocation5], 16
    $region33: #{tpu_custom_call.1} parent=1 // pred_fallthru
      _
    %104 = sfence
    %105 = vsyncpa [#allocation4], 1
    %106 = vsyncpa [#allocation7], 1
    %107 = vsyncpa [#allocation5], 1

</llo_original>
